<compile_context>
chip_gen: v6e
topology: v6e:2x2x1
jax: 0.10.0
libtpu: 0.0.40
codegen_flags: <defaults>
</compile_context>

<pallas_src>
import numpy as np
import jax
import jax.numpy as jnp
from jax.experimental import pallas as pl
from jax.experimental.pallas import tpu as pltpu


LAYER_SIZES = [(1, 5), (5, 5), (5, 1)]
NUM_DESC = 46            # 5 + 25 + 5 (weights) + 5 + 5 + 1 (biases)

# Flat layout of the 46 generated target-MLP parameters (matches the
# descriptor concatenation order below):
_W1_OFF = 0      # w1[0, j]           at  0 + j,        j in [0, 5)
_W2_OFF = 5      # w2[j, i]           at  5 + 5*j + i
_W3_OFF = 30     # w3[i, 0]           at 30 + i
_B1_OFF = 35     # b1[j]              at 35 + j
_B2_OFF = 40     # b2[i]              at 40 + i
_B3_OFF = 45     # b3[0]              at 45


# ----------------------------------------------------------------------------
# Descriptor construction (mirrors sklearn-style `cartesian` in the module)
# ----------------------------------------------------------------------------
def cartesian(arrays):
    arrays = [np.asarray(a) for a in arrays]
    grids = np.meshgrid(*arrays, indexing="ij")
    return np.stack([g.ravel() for g in grids], axis=-1)


def create_weight_data(layer_index):
    in_dim, out_dim = LAYER_SIZES[layer_index]
    data = cartesian([
        np.asarray([1]),                 # is_weight
        np.asarray([layer_index]),       # layer
        np.arange(in_dim),               # weight_row
        np.arange(out_dim),              # weight_column
        np.asarray([0]),                 # bias
    ])
    return data.astype(np.float32)       # (in_dim * out_dim, 5)


def create_bias_data(layer_index):
    out_dim = LAYER_SIZES[layer_index][1]
    data = cartesian([
        np.asarray([0]),                 # is_weight
        np.asarray([layer_index]),       # layer
        np.asarray([0]),                 # weight_row
        np.asarray([0]),                 # weight_column
        np.arange(out_dim),              # bias
    ])
    return data.astype(np.float32)       # (out_dim, 5)


# Concatenated descriptor table, (46, 5), order = [W1, W2, W3, b1, b2, b3]
# (row-major within each weight block, matching the .view() reshapes).
_ALL_DESC_NP = np.concatenate(
    [create_weight_data(i) for i in range(3)]
    + [create_bias_data(i) for i in range(3)], axis=0)
assert _ALL_DESC_NP.shape == (NUM_DESC, 5)


# ----------------------------------------------------------------------------
# Stage 1+2 (grid-invariant): hypernetwork + unpack, done ONCE in plain JAX.
# Output: flat (46,) f32 vector in the layout documented above.
# ----------------------------------------------------------------------------
def generate_target_params(hyper_params):
    hw1, hb1, hw2, hb2, hw3, hb3 = hyper_params
    d = jnp.asarray(_ALL_DESC_NP)                       # (46, 5)
    h = jax.nn.relu(d @ hw1.T + hb1)                    # (46, 10)
    h = jax.nn.relu(h @ hw2.T + hb2)                    # (46, 10)
    gen = h @ hw3.T + hb3                               # (46, 1)
    return gen.reshape(NUM_DESC).astype(jnp.float32)


# ----------------------------------------------------------------------------
# Parameter init (deterministic, PyTorch nn.Linear-style uniform)
# ----------------------------------------------------------------------------
def linear_init(key, in_f, out_f):
    bound = 1.0 / np.sqrt(in_f)
    kw, kb = jax.random.split(key)
    W = jax.random.uniform(kw, (out_f, in_f), jnp.float32, -bound, bound)
    b = jax.random.uniform(kb, (out_f,), jnp.float32, -bound, bound)
    return W, b


# ----------------------------------------------------------------------------
# Pallas kernel: generated target MLP (1 -> 5 -> 5 -> 1, ReLU) over a dense
# 2-D batch block.  Feature axis is Python-unrolled; all math is VALU
# broadcast-FMA + ReLU over full (block_rows, C) vreg-dense blocks.
# The 46 generated params arrive as scalars in SMEM.
# ----------------------------------------------------------------------------
def target_mlp_kernel(p_ref, x_ref, o_ref):
    x = x_ref[...]                                       # (bm, bn) f32

    # Layer 1 (1 -> 5): h1_j = relu(w1[0,j] * x + b1[j])
    h1 = [jnp.maximum(p_ref[_W1_OFF + j] * x + p_ref[_B1_OFF + j], 0.0)
          for j in range(5)]

    # Layers 2 (5 -> 5) and 3 (5 -> 1), interleaved so only ~8 block-sized
    # temporaries are live at once.
    out = None
    for i in range(5):
        s = h1[0] * p_ref[_W2_OFF + 0 * 5 + i]
        for j in range(1, 5):
            s = s + h1[j] * p_ref[_W2_OFF + 5 * j + i]
        h2_i = jnp.maximum(s + p_ref[_B2_OFF + i], 0.0)
        contrib = h2_i * p_ref[_W3_OFF + i]
        out = contrib if out is None else out + contrib

    o_ref[...] = out + p_ref[_B3_OFF]


# ----------------------------------------------------------------------------
# Wrapper: hoisted hypernet, 2-D lane/sublane-dense batch tiling, padded tail.
# ----------------------------------------------------------------------------
def _round_up(n, m):
    return ((n + m - 1) // m) * m


def hypermodel_forward(x, hyper_params, *, bm=128, bn=1024):
    N = x.shape[0]

    # Grid-invariant part: computed once, passed as a tiny SMEM array.
    params = generate_target_params(hyper_params)        # (46,) f32

    # Lay the batch out 2-D: C lanes (multiple of 128), rows padded to 8.
    C = min(bn, _round_up(max(N, 1), 128))
    R = -(-N // C)                                       # cdiv
    R_pad = _round_up(R, 8)
    if R_pad <= bm:
        block_rows = R_pad                               # single full block
        grid_r = 1
    else:
        R_pad = _round_up(R_pad, bm)
        block_rows = bm
        grid_r = R_pad // bm
    N_pad = R_pad * C

    x_flat = jnp.zeros((N_pad,), jnp.float32).at[:N].set(
        x.reshape(N).astype(jnp.float32))
    x2d = x_flat.reshape(R_pad, C)

    out2d = pl.pallas_call(
        target_mlp_kernel,
        out_shape=jax.ShapeDtypeStruct((R_pad, C), jnp.float32),
        grid=(grid_r,),
        in_specs=[
            pl.BlockSpec(memory_space=pltpu.MemorySpace.SMEM),     # 46 params
            pl.BlockSpec((block_rows, C), lambda i: (i, 0)),       # x block
        ],
        out_specs=pl.BlockSpec((block_rows, C), lambda i: (i, 0)),
        compiler_params=pltpu.CompilerParams(
            dimension_semantics=("parallel",)),
    )(params, x2d)

    return out2d.reshape(N_pad)[:N].reshape(N, 1)


# ----------------------------------------------------------------------------
# Independent pure-JAX reference (mirrors the PyTorch module structure)
# ----------------------------------------------------------------------------
def reference_forward(x, hyper_params):
    hw1, hb1, hw2, hb2, hw3, hb3 = hyper_params

    def hyper(d):
        h = jax.nn.relu(d @ hw1.T + hb1)
        h = jax.nn.relu(h @ hw2.T + hb2)
        return h @ hw3.T + hb3

    w1 = hyper(jnp.asarray(create_weight_data(0))).reshape(1, 5)
    w2 = hyper(jnp.asarray(create_weight_data(1))).reshape(5, 5)
    w3 = hyper(jnp.asarray(create_weight_data(2))).reshape(5, 1)
    b1 = hyper(jnp.asarray(create_bias_data(0))).reshape(5)
    b2 = hyper(jnp.asarray(create_bias_data(1))).reshape(5)
    b3 = hyper(jnp.asarray(create_bias_data(2))).reshape(1)

    h = jax.nn.relu(x @ w1 + b1)
    h = jax.nn.relu(h @ w2 + b2)
    return h @ w3 + b3


if __name__ == "__main__":
    key = jax.random.PRNGKey(0)
    k1, k2, k3, kx = jax.random.split(key, 4)

    # Hypernetwork parameters: Linear(5,10), Linear(10,10), Linear(10,1)
    hw1, hb1 = linear_init(k1, 5, 10)
    hw2, hb2 = linear_init(k2, 10, 10)
    hw3, hb3 = linear_init(k3, 10, 1)
    hyper_params = (hw1, hb1, hw2, hb2, hw3, hb3)

    fwd = jax.jit(lambda xx: hypermodel_forward(xx, hyper_params))

    # Batch exercising the lane-dense 2-D layout (2048 -> (8, 1024) padded).
    x = jax.random.normal(kx, (2048, 1), jnp.float32)
    out = jax.block_until_ready(fwd(x))
    ref = reference_forward(x, hyper_params)
    np.testing.assert_allclose(np.asarray(out), np.asarray(ref),
                               rtol=1e-5, atol=2e-5)

    # Small ragged batch exercising the padded-tail path.
    xt = jax.random.normal(kx, (37, 1), jnp.float32)
    outt = jax.block_until_ready(fwd(xt))
    reft = reference_forward(xt, hyper_params)
    np.testing.assert_allclose(np.asarray(outt), np.asarray(reft),
                               rtol=1e-5, atol=2e-5)

    print("KERNEL_OK")
</pallas_src>

<mosaic_0001>
module attributes {stable_mosaic.version = 11 : i64} {
  func.func @target_mlp_kernel(%arg0: i32, %arg1: memref<46xf32, #tpu.memory_space<smem>>, %arg2: memref<8x1024xf32, #tpu.memory_space<vmem>>, %arg3: memref<8x1024xf32, #tpu.memory_space<vmem>>) attributes {dimension_semantics = [#tpu.dimension_semantics<parallel>], iteration_bounds = array<i64: 1>, scalar_prefetch = 0 : i64, scratch_operands = 0 : i64, tpu.core_type = #tpu.core_type<tc>, window_params = [{transform_indices = @transform_0, window_bounds = array<i64: 46>}, {transform_indices = @transform_1, window_bounds = array<i64: 8, 1024>}, {transform_indices = @transform_2, window_bounds = array<i64: 8, 1024>}]} {
    %c0 = arith.constant 0 : index
    %c0_0 = arith.constant 0 : index
    %0 = vector.load %arg2[%c0, %c0_0] : memref<8x1024xf32, #tpu.memory_space<vmem>>, vector<8x1024xf32>
    %c0_1 = arith.constant 0 : index
    %1 = memref.load %arg1[%c0_1] : memref<46xf32, #tpu.memory_space<smem>>
    %2 = vector.broadcast %1 : f32 to vector<8x1024xf32>
    %3 = arith.mulf %2, %0 : vector<8x1024xf32>
    %c35 = arith.constant 35 : index
    %4 = memref.load %arg1[%c35] : memref<46xf32, #tpu.memory_space<smem>>
    %5 = vector.broadcast %4 : f32 to vector<8x1024xf32>
    %6 = arith.addf %3, %5 : vector<8x1024xf32>
    %cst = arith.constant 0.000000e+00 : f32
    %7 = vector.broadcast %cst : f32 to vector<8x1024xf32>
    %8 = arith.maximumf %6, %7 : vector<8x1024xf32>
    %c1 = arith.constant 1 : index
    %9 = memref.load %arg1[%c1] : memref<46xf32, #tpu.memory_space<smem>>
    %10 = vector.broadcast %9 : f32 to vector<8x1024xf32>
    %11 = arith.mulf %10, %0 : vector<8x1024xf32>
    %c36 = arith.constant 36 : index
    %12 = memref.load %arg1[%c36] : memref<46xf32, #tpu.memory_space<smem>>
    %13 = vector.broadcast %12 : f32 to vector<8x1024xf32>
    %14 = arith.addf %11, %13 : vector<8x1024xf32>
    %cst_2 = arith.constant 0.000000e+00 : f32
    %15 = vector.broadcast %cst_2 : f32 to vector<8x1024xf32>
    %16 = arith.maximumf %14, %15 : vector<8x1024xf32>
    %c2 = arith.constant 2 : index
    %17 = memref.load %arg1[%c2] : memref<46xf32, #tpu.memory_space<smem>>
    %18 = vector.broadcast %17 : f32 to vector<8x1024xf32>
    %19 = arith.mulf %18, %0 : vector<8x1024xf32>
    %c37 = arith.constant 37 : index
    %20 = memref.load %arg1[%c37] : memref<46xf32, #tpu.memory_space<smem>>
    %21 = vector.broadcast %20 : f32 to vector<8x1024xf32>
    %22 = arith.addf %19, %21 : vector<8x1024xf32>
    %cst_3 = arith.constant 0.000000e+00 : f32
    %23 = vector.broadcast %cst_3 : f32 to vector<8x1024xf32>
    %24 = arith.maximumf %22, %23 : vector<8x1024xf32>
    %c3 = arith.constant 3 : index
    %25 = memref.load %arg1[%c3] : memref<46xf32, #tpu.memory_space<smem>>
    %26 = vector.broadcast %25 : f32 to vector<8x1024xf32>
    %27 = arith.mulf %26, %0 : vector<8x1024xf32>
    %c38 = arith.constant 38 : index
    %28 = memref.load %arg1[%c38] : memref<46xf32, #tpu.memory_space<smem>>
    %29 = vector.broadcast %28 : f32 to vector<8x1024xf32>
    %30 = arith.addf %27, %29 : vector<8x1024xf32>
    %cst_4 = arith.constant 0.000000e+00 : f32
    %31 = vector.broadcast %cst_4 : f32 to vector<8x1024xf32>
    %32 = arith.maximumf %30, %31 : vector<8x1024xf32>
    %c4 = arith.constant 4 : index
    %33 = memref.load %arg1[%c4] : memref<46xf32, #tpu.memory_space<smem>>
    %34 = vector.broadcast %33 : f32 to vector<8x1024xf32>
    %35 = arith.mulf %34, %0 : vector<8x1024xf32>
    %c39 = arith.constant 39 : index
    %36 = memref.load %arg1[%c39] : memref<46xf32, #tpu.memory_space<smem>>
    %37 = vector.broadcast %36 : f32 to vector<8x1024xf32>
    %38 = arith.addf %35, %37 : vector<8x1024xf32>
    %cst_5 = arith.constant 0.000000e+00 : f32
    %39 = vector.broadcast %cst_5 : f32 to vector<8x1024xf32>
    %40 = arith.maximumf %38, %39 : vector<8x1024xf32>
    %c5 = arith.constant 5 : index
    %41 = memref.load %arg1[%c5] : memref<46xf32, #tpu.memory_space<smem>>
    %42 = vector.broadcast %41 : f32 to vector<8x1024xf32>
    %43 = arith.mulf %8, %42 : vector<8x1024xf32>
    %c10 = arith.constant 10 : index
    %44 = memref.load %arg1[%c10] : memref<46xf32, #tpu.memory_space<smem>>
    %45 = vector.broadcast %44 : f32 to vector<8x1024xf32>
    %46 = arith.mulf %16, %45 : vector<8x1024xf32>
    %47 = arith.addf %43, %46 : vector<8x1024xf32>
    %c15 = arith.constant 15 : index
    %48 = memref.load %arg1[%c15] : memref<46xf32, #tpu.memory_space<smem>>
    %49 = vector.broadcast %48 : f32 to vector<8x1024xf32>
    %50 = arith.mulf %24, %49 : vector<8x1024xf32>
    %51 = arith.addf %47, %50 : vector<8x1024xf32>
    %c20 = arith.constant 20 : index
    %52 = memref.load %arg1[%c20] : memref<46xf32, #tpu.memory_space<smem>>
    %53 = vector.broadcast %52 : f32 to vector<8x1024xf32>
    %54 = arith.mulf %32, %53 : vector<8x1024xf32>
    %55 = arith.addf %51, %54 : vector<8x1024xf32>
    %c25 = arith.constant 25 : index
    %56 = memref.load %arg1[%c25] : memref<46xf32, #tpu.memory_space<smem>>
    %57 = vector.broadcast %56 : f32 to vector<8x1024xf32>
    %58 = arith.mulf %40, %57 : vector<8x1024xf32>
    %59 = arith.addf %55, %58 : vector<8x1024xf32>
    %c40 = arith.constant 40 : index
    %60 = memref.load %arg1[%c40] : memref<46xf32, #tpu.memory_space<smem>>
    %61 = vector.broadcast %60 : f32 to vector<8x1024xf32>
    %62 = arith.addf %59, %61 : vector<8x1024xf32>
    %cst_6 = arith.constant 0.000000e+00 : f32
    %63 = vector.broadcast %cst_6 : f32 to vector<8x1024xf32>
    %64 = arith.maximumf %62, %63 : vector<8x1024xf32>
    %c30 = arith.constant 30 : index
    %65 = memref.load %arg1[%c30] : memref<46xf32, #tpu.memory_space<smem>>
    %66 = vector.broadcast %65 : f32 to vector<8x1024xf32>
    %67 = arith.mulf %64, %66 : vector<8x1024xf32>
    %c6 = arith.constant 6 : index
    %68 = memref.load %arg1[%c6] : memref<46xf32, #tpu.memory_space<smem>>
    %69 = vector.broadcast %68 : f32 to vector<8x1024xf32>
    %70 = arith.mulf %8, %69 : vector<8x1024xf32>
    %c11 = arith.constant 11 : index
    %71 = memref.load %arg1[%c11] : memref<46xf32, #tpu.memory_space<smem>>
    %72 = vector.broadcast %71 : f32 to vector<8x1024xf32>
    %73 = arith.mulf %16, %72 : vector<8x1024xf32>
    %74 = arith.addf %70, %73 : vector<8x1024xf32>
    %c16 = arith.constant 16 : index
    %75 = memref.load %arg1[%c16] : memref<46xf32, #tpu.memory_space<smem>>
    %76 = vector.broadcast %75 : f32 to vector<8x1024xf32>
    %77 = arith.mulf %24, %76 : vector<8x1024xf32>
    %78 = arith.addf %74, %77 : vector<8x1024xf32>
    %c21 = arith.constant 21 : index
    %79 = memref.load %arg1[%c21] : memref<46xf32, #tpu.memory_space<smem>>
    %80 = vector.broadcast %79 : f32 to vector<8x1024xf32>
    %81 = arith.mulf %32, %80 : vector<8x1024xf32>
    %82 = arith.addf %78, %81 : vector<8x1024xf32>
    %c26 = arith.constant 26 : index
    %83 = memref.load %arg1[%c26] : memref<46xf32, #tpu.memory_space<smem>>
    %84 = vector.broadcast %83 : f32 to vector<8x1024xf32>
    %85 = arith.mulf %40, %84 : vector<8x1024xf32>
    %86 = arith.addf %82, %85 : vector<8x1024xf32>
    %c41 = arith.constant 41 : index
    %87 = memref.load %arg1[%c41] : memref<46xf32, #tpu.memory_space<smem>>
    %88 = vector.broadcast %87 : f32 to vector<8x1024xf32>
    %89 = arith.addf %86, %88 : vector<8x1024xf32>
    %cst_7 = arith.constant 0.000000e+00 : f32
    %90 = vector.broadcast %cst_7 : f32 to vector<8x1024xf32>
    %91 = arith.maximumf %89, %90 : vector<8x1024xf32>
    %c31 = arith.constant 31 : index
    %92 = memref.load %arg1[%c31] : memref<46xf32, #tpu.memory_space<smem>>
    %93 = vector.broadcast %92 : f32 to vector<8x1024xf32>
    %94 = arith.mulf %91, %93 : vector<8x1024xf32>
    %95 = arith.addf %67, %94 : vector<8x1024xf32>
    %c7 = arith.constant 7 : index
    %96 = memref.load %arg1[%c7] : memref<46xf32, #tpu.memory_space<smem>>
    %97 = vector.broadcast %96 : f32 to vector<8x1024xf32>
    %98 = arith.mulf %8, %97 : vector<8x1024xf32>
    %c12 = arith.constant 12 : index
    %99 = memref.load %arg1[%c12] : memref<46xf32, #tpu.memory_space<smem>>
    %100 = vector.broadcast %99 : f32 to vector<8x1024xf32>
    %101 = arith.mulf %16, %100 : vector<8x1024xf32>
    %102 = arith.addf %98, %101 : vector<8x1024xf32>
    %c17 = arith.constant 17 : index
    %103 = memref.load %arg1[%c17] : memref<46xf32, #tpu.memory_space<smem>>
    %104 = vector.broadcast %103 : f32 to vector<8x1024xf32>
    %105 = arith.mulf %24, %104 : vector<8x1024xf32>
    %106 = arith.addf %102, %105 : vector<8x1024xf32>
    %c22 = arith.constant 22 : index
    %107 = memref.load %arg1[%c22] : memref<46xf32, #tpu.memory_space<smem>>
    %108 = vector.broadcast %107 : f32 to vector<8x1024xf32>
    %109 = arith.mulf %32, %108 : vector<8x1024xf32>
    %110 = arith.addf %106, %109 : vector<8x1024xf32>
    %c27 = arith.constant 27 : index
    %111 = memref.load %arg1[%c27] : memref<46xf32, #tpu.memory_space<smem>>
    %112 = vector.broadcast %111 : f32 to vector<8x1024xf32>
    %113 = arith.mulf %40, %112 : vector<8x1024xf32>
    %114 = arith.addf %110, %113 : vector<8x1024xf32>
    %c42 = arith.constant 42 : index
    %115 = memref.load %arg1[%c42] : memref<46xf32, #tpu.memory_space<smem>>
    %116 = vector.broadcast %115 : f32 to vector<8x1024xf32>
    %117 = arith.addf %114, %116 : vector<8x1024xf32>
    %cst_8 = arith.constant 0.000000e+00 : f32
    %118 = vector.broadcast %cst_8 : f32 to vector<8x1024xf32>
    %119 = arith.maximumf %117, %118 : vector<8x1024xf32>
    %c32 = arith.constant 32 : index
    %120 = memref.load %arg1[%c32] : memref<46xf32, #tpu.memory_space<smem>>
    %121 = vector.broadcast %120 : f32 to vector<8x1024xf32>
    %122 = arith.mulf %119, %121 : vector<8x1024xf32>
    %123 = arith.addf %95, %122 : vector<8x1024xf32>
    %c8 = arith.constant 8 : index
    %124 = memref.load %arg1[%c8] : memref<46xf32, #tpu.memory_space<smem>>
    %125 = vector.broadcast %124 : f32 to vector<8x1024xf32>
    %126 = arith.mulf %8, %125 : vector<8x1024xf32>
    %c13 = arith.constant 13 : index
    %127 = memref.load %arg1[%c13] : memref<46xf32, #tpu.memory_space<smem>>
    %128 = vector.broadcast %127 : f32 to vector<8x1024xf32>
    %129 = arith.mulf %16, %128 : vector<8x1024xf32>
    %130 = arith.addf %126, %129 : vector<8x1024xf32>
    %c18 = arith.constant 18 : index
    %131 = memref.load %arg1[%c18] : memref<46xf32, #tpu.memory_space<smem>>
    %132 = vector.broadcast %131 : f32 to vector<8x1024xf32>
    %133 = arith.mulf %24, %132 : vector<8x1024xf32>
    %134 = arith.addf %130, %133 : vector<8x1024xf32>
    %c23 = arith.constant 23 : index
    %135 = memref.load %arg1[%c23] : memref<46xf32, #tpu.memory_space<smem>>
    %136 = vector.broadcast %135 : f32 to vector<8x1024xf32>
    %137 = arith.mulf %32, %136 : vector<8x1024xf32>
    %138 = arith.addf %134, %137 : vector<8x1024xf32>
    %c28 = arith.constant 28 : index
    %139 = memref.load %arg1[%c28] : memref<46xf32, #tpu.memory_space<smem>>
    %140 = vector.broadcast %139 : f32 to vector<8x1024xf32>
    %141 = arith.mulf %40, %140 : vector<8x1024xf32>
    %142 = arith.addf %138, %141 : vector<8x1024xf32>
    %c43 = arith.constant 43 : index
    %143 = memref.load %arg1[%c43] : memref<46xf32, #tpu.memory_space<smem>>
    %144 = vector.broadcast %143 : f32 to vector<8x1024xf32>
    %145 = arith.addf %142, %144 : vector<8x1024xf32>
    %cst_9 = arith.constant 0.000000e+00 : f32
    %146 = vector.broadcast %cst_9 : f32 to vector<8x1024xf32>
    %147 = arith.maximumf %145, %146 : vector<8x1024xf32>
    %c33 = arith.constant 33 : index
    %148 = memref.load %arg1[%c33] : memref<46xf32, #tpu.memory_space<smem>>
    %149 = vector.broadcast %148 : f32 to vector<8x1024xf32>
    %150 = arith.mulf %147, %149 : vector<8x1024xf32>
    %151 = arith.addf %123, %150 : vector<8x1024xf32>
    %c9 = arith.constant 9 : index
    %152 = memref.load %arg1[%c9] : memref<46xf32, #tpu.memory_space<smem>>
    %153 = vector.broadcast %152 : f32 to vector<8x1024xf32>
    %154 = arith.mulf %8, %153 : vector<8x1024xf32>
    %c14 = arith.constant 14 : index
    %155 = memref.load %arg1[%c14] : memref<46xf32, #tpu.memory_space<smem>>
    %156 = vector.broadcast %155 : f32 to vector<8x1024xf32>
    %157 = arith.mulf %16, %156 : vector<8x1024xf32>
    %158 = arith.addf %154, %157 : vector<8x1024xf32>
    %c19 = arith.constant 19 : index
    %159 = memref.load %arg1[%c19] : memref<46xf32, #tpu.memory_space<smem>>
    %160 = vector.broadcast %159 : f32 to vector<8x1024xf32>
    %161 = arith.mulf %24, %160 : vector<8x1024xf32>
    %162 = arith.addf %158, %161 : vector<8x1024xf32>
    %c24 = arith.constant 24 : index
    %163 = memref.load %arg1[%c24] : memref<46xf32, #tpu.memory_space<smem>>
    %164 = vector.broadcast %163 : f32 to vector<8x1024xf32>
    %165 = arith.mulf %32, %164 : vector<8x1024xf32>
    %166 = arith.addf %162, %165 : vector<8x1024xf32>
    %c29 = arith.constant 29 : index
    %167 = memref.load %arg1[%c29] : memref<46xf32, #tpu.memory_space<smem>>
    %168 = vector.broadcast %167 : f32 to vector<8x1024xf32>
    %169 = arith.mulf %40, %168 : vector<8x1024xf32>
    %170 = arith.addf %166, %169 : vector<8x1024xf32>
    %c44 = arith.constant 44 : index
    %171 = memref.load %arg1[%c44] : memref<46xf32, #tpu.memory_space<smem>>
    %172 = vector.broadcast %171 : f32 to vector<8x1024xf32>
    %173 = arith.addf %170, %172 : vector<8x1024xf32>
    %cst_10 = arith.constant 0.000000e+00 : f32
    %174 = vector.broadcast %cst_10 : f32 to vector<8x1024xf32>
    %175 = arith.maximumf %173, %174 : vector<8x1024xf32>
    %c34 = arith.constant 34 : index
    %176 = memref.load %arg1[%c34] : memref<46xf32, #tpu.memory_space<smem>>
    %177 = vector.broadcast %176 : f32 to vector<8x1024xf32>
    %178 = arith.mulf %175, %177 : vector<8x1024xf32>
    %179 = arith.addf %151, %178 : vector<8x1024xf32>
    %c45 = arith.constant 45 : index
    %180 = memref.load %arg1[%c45] : memref<46xf32, #tpu.memory_space<smem>>
    %181 = vector.broadcast %180 : f32 to vector<8x1024xf32>
    %182 = arith.addf %179, %181 : vector<8x1024xf32>
    %c0_11 = arith.constant 0 : index
    %c0_12 = arith.constant 0 : index
    %183 = vector.load %arg3[%c0_11, %c0_12] : memref<8x1024xf32, #tpu.memory_space<vmem>>, vector<8x1024xf32>
    tpu.vector_store %arg3[%c0_11, %c0_12], %182 {strides = array<i32>} : memref<8x1024xf32, #tpu.memory_space<vmem>>, vector<8x1024xf32>,
    return
  }
  func.func @transform_0(%arg0: i32) -> i32 {
    %c0_i32 = arith.constant 0 : i32
    %c0_i32_0 = arith.constant 0 : i32
    return %c0_i32 : i32
  }
  func.func @transform_1(%arg0: i32) -> (i32, i32) {
    %c0_i32 = arith.constant 0 : i32
    %c0_i32_0 = arith.constant 0 : i32
    return %arg0, %c0_i32 : i32, i32
  }
  func.func @transform_2(%arg0: i32) -> (i32, i32) {
    %c0_i32 = arith.constant 0 : i32
    %c0_i32_0 = arith.constant 0 : i32
    return %arg0, %c0_i32 : i32, i32
  }
}

</mosaic_0001>

<llo_original>
// kernel: _lambda_.1
$region0: #{_lambda_.1}
  #allocation0 [shape = 'u32[]', space=smem, size = 0x4, offset = 0x4, fixed_abs, tag = 'smem constant byte address 0x4 - core index']
  #allocation1 [shape = 'u32[144,128]{1,0:T(1,128)}', space=vmem, size = 0x12000, scoped, tag = 'internal scratch']
  %s0 = inlined_call_operand.vmem [shape: f32[46], index: 0, kind: input, shape index: {}]
  %s1 = inlined_call_operand.vmem [shape: f32[8,1024], index: 1, kind: input, shape index: {}]
  %s2 = inlined_call_operand.vmem [shape: f32[8,1024], index: 2, kind: output, shape index: {}]
  %s3 = sld [smem:[#allocation0]]
  $region22: #{_lambda_.1} parent=0
    _
  %s5 = ssub.s32 1, %s3
  %s6 = scalar_select 0, %s5, %s3
  $region1: #{_lambda_.1} parent=0
    #allocation2 [shape = 'u8[512]{0}', space=smem, size = 0x200, scoped, tag = 'input window, operand 0, single buffered']
    #allocation3 [shape = 's32[1]{0}', space=sflag, size = 0x4, scoped, tag = 'scoped memory for _lambda_.1']
    %7 = vsyncpa [#allocation3], 0
    // Predicated region
    $region2: #{_lambda_.1} parent=1 // pred_check
      _
    $region3: #{_lambda_.1} parent=1 // pred_check_branch
      %9 = sbr.rel (0) target = $region5
    $region4: #{_lambda_.1} parent=1 // pred_region
      %s11 = ssub.s32 16, 16
      %12 = vsyncadd [#allocation3], %s11
      %s14 = sshll.u32 %s0, 4
      %s15 = int_to_ptr.vmem [resolvable:$true] %s14
      %17 = dma.vmem_to_smem %s15, 16, [#allocation2], [#allocation3]
    $region5: #{_lambda_.1} parent=1 // pred_fallthru
      _
    // Predicated region
    $region6: #{_lambda_.1} parent=1 // pred_check
      _
    $region7: #{_lambda_.1} parent=1 // pred_check_branch
      %19 = sbr.rel (0) target = $region9
    $region8: #{_lambda_.1} parent=1 // pred_region
      _
    $region9: #{_lambda_.1} parent=1 // pred_fallthru
      _
    // Predicated region
    $region10: #{_lambda_.1} parent=1 // pred_check
      _
    $region11: #{_lambda_.1} parent=1 // pred_check_branch
      %21 = sbr.rel (0) target = $region13
    $region12: #{_lambda_.1} parent=1 // pred_region
      %22 = dma.done [#allocation3], 16
    $region13: #{_lambda_.1} parent=1 // pred_fallthru
      _
    %23 = sfence
    %v24 = vld [vmem:[%s1] sm:$0xff]
    %v25 = vld [vmem:[%s1 + $0x8] sm:$0xff]
    %v26 = vld [vmem:[%s1 + $0x10] sm:$0xff]
    %v27 = vld [vmem:[%s1 + $0x18] sm:$0xff]
    %v28 = vld [vmem:[%s1 + $0x20] sm:$0xff]
    %v29 = vld [vmem:[%s1 + $0x28] sm:$0xff]
    %v30 = vld [vmem:[%s1 + $0x30] sm:$0xff]
    %v31 = vld [vmem:[%s1 + $0x38] sm:$0xff]
    %s32 = sld [smem:[#allocation2]]
    %v33 = vstv %s32
    %v34 = vmul.f32 %v33, %v24
    %v35 = vmul.f32 %v33, %v25
    %v36 = vmul.f32 %v33, %v26
    %v37 = vmul.f32 %v33, %v27
    %v38 = vmul.f32 %v33, %v28
    %v39 = vmul.f32 %v33, %v29
    %v40 = vmul.f32 %v33, %v30
    %v41 = vmul.f32 %v33, %v31
    %s42 = sld [smem:[#allocation2 + $0x23]]
    %v43 = vstv %s42
    %v44 = vadd.f32 %v34, %v43
    %v45 = vadd.f32 %v35, %v43
    %v46 = vadd.f32 %v36, %v43
    %v47 = vadd.f32 %v37, %v43
    %v48 = vadd.f32 %v38, %v43
    %v49 = vadd.f32 %v39, %v43
    %v50 = vadd.f32 %v40, %v43
    %v51 = vadd.f32 %v41, %v43
    %v52 = vmax.f32 %v44, 0.0
    %v53 = vmax.f32 %v45, 0.0
    %v54 = vmax.f32 %v46, 0.0
    %v55 = vmax.f32 %v47, 0.0
    %v56 = vmax.f32 %v48, 0.0
    %v57 = vmax.f32 %v49, 0.0
    %v58 = vmax.f32 %v50, 0.0
    %v59 = vmax.f32 %v51, 0.0
    %s60 = sld [smem:[#allocation2 + $0x1]]
    %v61 = vstv %s60
    %v62 = vmul.f32 %v61, %v24
    %v63 = vmul.f32 %v61, %v25
    %v64 = vmul.f32 %v61, %v26
    %v65 = vmul.f32 %v61, %v27
    %v66 = vmul.f32 %v61, %v28
    %v67 = vmul.f32 %v61, %v29
    %v68 = vmul.f32 %v61, %v30
    %v69 = vmul.f32 %v61, %v31
    %s70 = sld [smem:[#allocation2 + $0x24]]
    %v71 = vstv %s70
    %v72 = vadd.f32 %v62, %v71
    %v73 = vadd.f32 %v63, %v71
    %v74 = vadd.f32 %v64, %v71
    %v75 = vadd.f32 %v65, %v71
    %v76 = vadd.f32 %v66, %v71
    %v77 = vadd.f32 %v67, %v71
    %v78 = vadd.f32 %v68, %v71
    %v79 = vadd.f32 %v69, %v71
    %v80 = vmax.f32 %v72, 0.0
    %v81 = vmax.f32 %v73, 0.0
    %v82 = vmax.f32 %v74, 0.0
    %v83 = vmax.f32 %v75, 0.0
    %v84 = vmax.f32 %v76, 0.0
    %v85 = vmax.f32 %v77, 0.0
    %v86 = vmax.f32 %v78, 0.0
    %v87 = vmax.f32 %v79, 0.0
    %s88 = sld [smem:[#allocation2 + $0x2]]
    %v89 = vstv %s88
    %v90 = vmul.f32 %v89, %v24
    %v91 = vmul.f32 %v89, %v25
    %v92 = vmul.f32 %v89, %v26
    %v93 = vmul.f32 %v89, %v27
    %v94 = vmul.f32 %v89, %v28
    %v95 = vmul.f32 %v89, %v29
    %v96 = vmul.f32 %v89, %v30
    %v97 = vmul.f32 %v89, %v31
    %s98 = sld [smem:[#allocation2 + $0x25]]
    %v99 = vstv %s98
    %v100 = vadd.f32 %v90, %v99
    %v101 = vadd.f32 %v91, %v99
    %v102 = vadd.f32 %v92, %v99
    %v103 = vadd.f32 %v93, %v99
    %v104 = vadd.f32 %v94, %v99
    %v105 = vadd.f32 %v95, %v99
    %v106 = vadd.f32 %v96, %v99
    %v107 = vadd.f32 %v97, %v99
    %v108 = vmax.f32 %v100, 0.0
    %v109 = vmax.f32 %v101, 0.0
    %v110 = vmax.f32 %v102, 0.0
    %v111 = vmax.f32 %v103, 0.0
    %v112 = vmax.f32 %v104, 0.0
    %v113 = vmax.f32 %v105, 0.0
    %v114 = vmax.f32 %v106, 0.0
    %v115 = vmax.f32 %v107, 0.0
    %s116 = sld [smem:[#allocation2 + $0x3]]
    %v117 = vstv %s116
    %v118 = vmul.f32 %v117, %v24
    %v119 = vmul.f32 %v117, %v25
    %v120 = vmul.f32 %v117, %v26
    %v121 = vmul.f32 %v117, %v27
    %v122 = vmul.f32 %v117, %v28
    %v123 = vmul.f32 %v117, %v29
    %v124 = vmul.f32 %v117, %v30
    %v125 = vmul.f32 %v117, %v31
    %s126 = sld [smem:[#allocation2 + $0x26]]
    %v127 = vstv %s126
    %v128 = vadd.f32 %v118, %v127
    %v129 = vadd.f32 %v119, %v127
    %v130 = vadd.f32 %v120, %v127
    %v131 = vadd.f32 %v121, %v127
    %v132 = vadd.f32 %v122, %v127
    %v133 = vadd.f32 %v123, %v127
    %v134 = vadd.f32 %v124, %v127
    %v135 = vadd.f32 %v125, %v127
    %v136 = vmax.f32 %v128, 0.0
    %v137 = vmax.f32 %v129, 0.0
    %v138 = vmax.f32 %v130, 0.0
    %v139 = vmax.f32 %v131, 0.0
    %v140 = vmax.f32 %v132, 0.0
    %v141 = vmax.f32 %v133, 0.0
    %v142 = vmax.f32 %v134, 0.0
    %v143 = vmax.f32 %v135, 0.0
    %s144 = sld [smem:[#allocation2 + $0x4]]
    %v145 = vstv %s144
    %v146 = vmul.f32 %v145, %v24
    %v147 = vmul.f32 %v145, %v25
    %v148 = vmul.f32 %v145, %v26
    %v149 = vmul.f32 %v145, %v27
    %v150 = vmul.f32 %v145, %v28
    %v151 = vmul.f32 %v145, %v29
    %v152 = vmul.f32 %v145, %v30
    %v153 = vmul.f32 %v145, %v31
    %s154 = sld [smem:[#allocation2 + $0x27]]
    %v155 = vstv %s154
    %v156 = vadd.f32 %v146, %v155
    %v157 = vadd.f32 %v147, %v155
    %v158 = vadd.f32 %v148, %v155
    %v159 = vadd.f32 %v149, %v155
    %v160 = vadd.f32 %v150, %v155
    %v161 = vadd.f32 %v151, %v155
    %v162 = vadd.f32 %v152, %v155
    %v163 = vadd.f32 %v153, %v155
    %v164 = vmax.f32 %v156, 0.0
    %v165 = vmax.f32 %v157, 0.0
    %v166 = vmax.f32 %v158, 0.0
    %v167 = vmax.f32 %v159, 0.0
    %v168 = vmax.f32 %v160, 0.0
    %v169 = vmax.f32 %v161, 0.0
    %v170 = vmax.f32 %v162, 0.0
    %v171 = vmax.f32 %v163, 0.0
    %s172 = sld [smem:[#allocation2 + $0x5]]
    %v173 = vstv %s172
    %v174 = vmul.f32 %v52, %v173
    %v175 = vmul.f32 %v53, %v173
    %v176 = vmul.f32 %v54, %v173
    %v177 = vmul.f32 %v55, %v173
    %v178 = vmul.f32 %v56, %v173
    %v179 = vmul.f32 %v57, %v173
    %v180 = vmul.f32 %v58, %v173
    %v181 = vmul.f32 %v59, %v173
    %s182 = sld [smem:[#allocation2 + $0xa]]
    %v183 = vstv %s182
    %v184 = vmul.f32 %v80, %v183
    %v185 = vmul.f32 %v81, %v183
    %v186 = vmul.f32 %v82, %v183
    %v187 = vmul.f32 %v83, %v183
    %v188 = vmul.f32 %v84, %v183
    %v189 = vmul.f32 %v85, %v183
    %v190 = vmul.f32 %v86, %v183
    %v191 = vmul.f32 %v87, %v183
    %v192 = vadd.f32 %v174, %v184
    %v193 = vadd.f32 %v175, %v185
    %v194 = vadd.f32 %v176, %v186
    %v195 = vadd.f32 %v177, %v187
    %v196 = vadd.f32 %v178, %v188
    %v197 = vadd.f32 %v179, %v189
    %v198 = vadd.f32 %v180, %v190
    %v199 = vadd.f32 %v181, %v191
    %s200 = sld [smem:[#allocation2 + $0xf]]
    %v201 = vstv %s200
    %v202 = vmul.f32 %v108, %v201
    %v203 = vmul.f32 %v109, %v201
    %v204 = vmul.f32 %v110, %v201
    %v205 = vmul.f32 %v111, %v201
    %v206 = vmul.f32 %v112, %v201
    %v207 = vmul.f32 %v113, %v201
    %v208 = vmul.f32 %v114, %v201
    %v209 = vmul.f32 %v115, %v201
    %v210 = vadd.f32 %v192, %v202
    %v211 = vadd.f32 %v193, %v203
    %v212 = vadd.f32 %v194, %v204
    %v213 = vadd.f32 %v195, %v205
    %v214 = vadd.f32 %v196, %v206
    %v215 = vadd.f32 %v197, %v207
    %v216 = vadd.f32 %v198, %v208
    %v217 = vadd.f32 %v199, %v209
    %s218 = sld [smem:[#allocation2 + $0x14]]
    %v219 = vstv %s218
    %v220 = vmul.f32 %v136, %v219
    %v221 = vmul.f32 %v137, %v219
    %v222 = vmul.f32 %v138, %v219
    %v223 = vmul.f32 %v139, %v219
    %v224 = vmul.f32 %v140, %v219
    %v225 = vmul.f32 %v141, %v219
    %v226 = vmul.f32 %v142, %v219
    %v227 = vmul.f32 %v143, %v219
    %v228 = vadd.f32 %v210, %v220
    %v229 = vadd.f32 %v211, %v221
    %v230 = vadd.f32 %v212, %v222
    %v231 = vadd.f32 %v213, %v223
    %v232 = vadd.f32 %v214, %v224
    %v233 = vadd.f32 %v215, %v225
    %v234 = vadd.f32 %v216, %v226
    %v235 = vadd.f32 %v217, %v227
    %s236 = sld [smem:[#allocation2 + $0x19]]
    %v237 = vstv %s236
    %v238 = vmul.f32 %v164, %v237
    %v239 = vmul.f32 %v165, %v237
    %v240 = vmul.f32 %v166, %v237
    %v241 = vmul.f32 %v167, %v237
    %v242 = vmul.f32 %v168, %v237
    %v243 = vmul.f32 %v169, %v237
    %v244 = vmul.f32 %v170, %v237
    %v245 = vmul.f32 %v171, %v237
    %v246 = vadd.f32 %v228, %v238
    %v247 = vadd.f32 %v229, %v239
    %v248 = vadd.f32 %v230, %v240
    %v249 = vadd.f32 %v231, %v241
    %v250 = vadd.f32 %v232, %v242
    %v251 = vadd.f32 %v233, %v243
    %v252 = vadd.f32 %v234, %v244
    %v253 = vadd.f32 %v235, %v245
    %s254 = sld [smem:[#allocation2 + $0x28]]
    %v255 = vstv %s254
    %v256 = vadd.f32 %v246, %v255
    %v257 = vadd.f32 %v247, %v255
    %v258 = vadd.f32 %v248, %v255
    %v259 = vadd.f32 %v249, %v255
    %v260 = vadd.f32 %v250, %v255
    %v261 = vadd.f32 %v251, %v255
    %v262 = vadd.f32 %v252, %v255
    %v263 = vadd.f32 %v253, %v255
    %v264 = vmax.f32 %v256, 0.0
    %v265 = vmax.f32 %v257, 0.0
    %v266 = vmax.f32 %v258, 0.0
    %v267 = vmax.f32 %v259, 0.0
    %v268 = vmax.f32 %v260, 0.0
    %v269 = vmax.f32 %v261, 0.0
    %v270 = vmax.f32 %v262, 0.0
    %v271 = vmax.f32 %v263, 0.0
    %s272 = sld [smem:[#allocation2 + $0x1e]]
    %v273 = vstv %s272
    %v274 = vmul.f32 %v264, %v273
    %v275 = vmul.f32 %v265, %v273
    %v276 = vmul.f32 %v266, %v273
    %v277 = vmul.f32 %v267, %v273
    %v278 = vmul.f32 %v268, %v273
    %v279 = vmul.f32 %v269, %v273
    %v280 = vmul.f32 %v270, %v273
    %v281 = vmul.f32 %v271, %v273
    %s282 = sld [smem:[#allocation2 + $0x6]]
    %v283 = vstv %s282
    %v284 = vmul.f32 %v52, %v283
    %v285 = vmul.f32 %v53, %v283
    %v286 = vmul.f32 %v54, %v283
    %v287 = vmul.f32 %v55, %v283
    %v288 = vmul.f32 %v56, %v283
    %v289 = vmul.f32 %v57, %v283
    %v290 = vmul.f32 %v58, %v283
    %v291 = vmul.f32 %v59, %v283
    %s292 = sld [smem:[#allocation2 + $0xb]]
    %v293 = vstv %s292
    %v294 = vmul.f32 %v80, %v293
    %v295 = vmul.f32 %v81, %v293
    %v296 = vmul.f32 %v82, %v293
    %v297 = vmul.f32 %v83, %v293
    %v298 = vmul.f32 %v84, %v293
    %v299 = vmul.f32 %v85, %v293
    %v300 = vmul.f32 %v86, %v293
    %v301 = vmul.f32 %v87, %v293
    %v302 = vadd.f32 %v284, %v294
    %v303 = vadd.f32 %v285, %v295
    %v304 = vadd.f32 %v286, %v296
    %v305 = vadd.f32 %v287, %v297
    %v306 = vadd.f32 %v288, %v298
    %v307 = vadd.f32 %v289, %v299
    %v308 = vadd.f32 %v290, %v300
    %v309 = vadd.f32 %v291, %v301
    %s310 = sld [smem:[#allocation2 + $0x10]]
    %v311 = vstv %s310
    %v312 = vmul.f32 %v108, %v311
    %v313 = vmul.f32 %v109, %v311
    %v314 = vmul.f32 %v110, %v311
    %v315 = vmul.f32 %v111, %v311
    %v316 = vmul.f32 %v112, %v311
    %v317 = vmul.f32 %v113, %v311
    %v318 = vmul.f32 %v114, %v311
    %v319 = vmul.f32 %v115, %v311
    %v320 = vadd.f32 %v302, %v312
    %v321 = vadd.f32 %v303, %v313
    %v322 = vadd.f32 %v304, %v314
    %v323 = vadd.f32 %v305, %v315
    %v324 = vadd.f32 %v306, %v316
    %v325 = vadd.f32 %v307, %v317
    %v326 = vadd.f32 %v308, %v318
    %v327 = vadd.f32 %v309, %v319
    %s328 = sld [smem:[#allocation2 + $0x15]]
    %v329 = vstv %s328
    %v330 = vmul.f32 %v136, %v329
    %v331 = vmul.f32 %v137, %v329
    %v332 = vmul.f32 %v138, %v329
    %v333 = vmul.f32 %v139, %v329
    %v334 = vmul.f32 %v140, %v329
    %v335 = vmul.f32 %v141, %v329
    %v336 = vmul.f32 %v142, %v329
    %v337 = vmul.f32 %v143, %v329
    %v338 = vadd.f32 %v320, %v330
    %v339 = vadd.f32 %v321, %v331
    %v340 = vadd.f32 %v322, %v332
    %v341 = vadd.f32 %v323, %v333
    %v342 = vadd.f32 %v324, %v334
    %v343 = vadd.f32 %v325, %v335
    %v344 = vadd.f32 %v326, %v336
    %v345 = vadd.f32 %v327, %v337
    %s346 = sld [smem:[#allocation2 + $0x1a]]
    %v347 = vstv %s346
    %v348 = vmul.f32 %v164, %v347
    %v349 = vmul.f32 %v165, %v347
    %v350 = vmul.f32 %v166, %v347
    %v351 = vmul.f32 %v167, %v347
    %v352 = vmul.f32 %v168, %v347
    %v353 = vmul.f32 %v169, %v347
    %v354 = vmul.f32 %v170, %v347
    %v355 = vmul.f32 %v171, %v347
    %v356 = vadd.f32 %v338, %v348
    %v357 = vadd.f32 %v339, %v349
    %v358 = vadd.f32 %v340, %v350
    %v359 = vadd.f32 %v341, %v351
    %v360 = vadd.f32 %v342, %v352
    %v361 = vadd.f32 %v343, %v353
    %v362 = vadd.f32 %v344, %v354
    %v363 = vadd.f32 %v345, %v355
    %s364 = sld [smem:[#allocation2 + $0x29]]
    %v365 = vstv %s364
    %v366 = vadd.f32 %v356, %v365
    %v367 = vadd.f32 %v357, %v365
    %v368 = vadd.f32 %v358, %v365
    %v369 = vadd.f32 %v359, %v365
    %v370 = vadd.f32 %v360, %v365
    %v371 = vadd.f32 %v361, %v365
    %v372 = vadd.f32 %v362, %v365
    %v373 = vadd.f32 %v363, %v365
    %v374 = vmax.f32 %v366, 0.0
    %v375 = vmax.f32 %v367, 0.0
    %v376 = vmax.f32 %v368, 0.0
    %v377 = vmax.f32 %v369, 0.0
    %v378 = vmax.f32 %v370, 0.0
    %v379 = vmax.f32 %v371, 0.0
    %v380 = vmax.f32 %v372, 0.0
    %v381 = vmax.f32 %v373, 0.0
    %s382 = sld [smem:[#allocation2 + $0x1f]]
    %v383 = vstv %s382
    %v384 = vmul.f32 %v374, %v383
    %v385 = vmul.f32 %v375, %v383
    %v386 = vmul.f32 %v376, %v383
    %v387 = vmul.f32 %v377, %v383
    %v388 = vmul.f32 %v378, %v383
    %v389 = vmul.f32 %v379, %v383
    %v390 = vmul.f32 %v380, %v383
    %v391 = vmul.f32 %v381, %v383
    %v392 = vadd.f32 %v274, %v384
    %v393 = vadd.f32 %v275, %v385
    %v394 = vadd.f32 %v276, %v386
    %v395 = vadd.f32 %v277, %v387
    %v396 = vadd.f32 %v278, %v388
    %v397 = vadd.f32 %v279, %v389
    %v398 = vadd.f32 %v280, %v390
    %v399 = vadd.f32 %v281, %v391
    %s400 = sld [smem:[#allocation2 + $0x7]]
    %v401 = vstv %s400
    %v402 = vmul.f32 %v52, %v401
    %v403 = vmul.f32 %v53, %v401
    %v404 = vmul.f32 %v54, %v401
    %v405 = vmul.f32 %v55, %v401
    %v406 = vmul.f32 %v56, %v401
    %v407 = vmul.f32 %v57, %v401
    %v408 = vmul.f32 %v58, %v401
    %v409 = vmul.f32 %v59, %v401
    %s410 = sld [smem:[#allocation2 + $0xc]]
    %v411 = vstv %s410
    %v412 = vmul.f32 %v80, %v411
    %v413 = vmul.f32 %v81, %v411
    %v414 = vmul.f32 %v82, %v411
    %v415 = vmul.f32 %v83, %v411
    %v416 = vmul.f32 %v84, %v411
    %v417 = vmul.f32 %v85, %v411
    %v418 = vmul.f32 %v86, %v411
    %v419 = vmul.f32 %v87, %v411
    %v420 = vadd.f32 %v402, %v412
    %v421 = vadd.f32 %v403, %v413
    %v422 = vadd.f32 %v404, %v414
    %v423 = vadd.f32 %v405, %v415
    %v424 = vadd.f32 %v406, %v416
    %v425 = vadd.f32 %v407, %v417
    %v426 = vadd.f32 %v408, %v418
    %v427 = vadd.f32 %v409, %v419
    %s428 = sld [smem:[#allocation2 + $0x11]]
    %v429 = vstv %s428
    %v430 = vmul.f32 %v108, %v429
    %v431 = vmul.f32 %v109, %v429
    %v432 = vmul.f32 %v110, %v429
    %v433 = vmul.f32 %v111, %v429
    %v434 = vmul.f32 %v112, %v429
    %v435 = vmul.f32 %v113, %v429
    %v436 = vmul.f32 %v114, %v429
    %v437 = vmul.f32 %v115, %v429
    %v438 = vadd.f32 %v420, %v430
    %v439 = vadd.f32 %v421, %v431
    %v440 = vadd.f32 %v422, %v432
    %v441 = vadd.f32 %v423, %v433
    %v442 = vadd.f32 %v424, %v434
    %v443 = vadd.f32 %v425, %v435
    %v444 = vadd.f32 %v426, %v436
    %v445 = vadd.f32 %v427, %v437
    %s446 = sld [smem:[#allocation2 + $0x16]]
    %v447 = vstv %s446
    %v448 = vmul.f32 %v136, %v447
    %v449 = vmul.f32 %v137, %v447
    %v450 = vmul.f32 %v138, %v447
    %v451 = vmul.f32 %v139, %v447
    %v452 = vmul.f32 %v140, %v447
    %v453 = vmul.f32 %v141, %v447
    %v454 = vmul.f32 %v142, %v447
    %v455 = vmul.f32 %v143, %v447
    %v456 = vadd.f32 %v438, %v448
    %v457 = vadd.f32 %v439, %v449
    %v458 = vadd.f32 %v440, %v450
    %v459 = vadd.f32 %v441, %v451
    %v460 = vadd.f32 %v442, %v452
    %v461 = vadd.f32 %v443, %v453
    %v462 = vadd.f32 %v444, %v454
    %v463 = vadd.f32 %v445, %v455
    %s464 = sld [smem:[#allocation2 + $0x1b]]
    %v465 = vstv %s464
    %v466 = vmul.f32 %v164, %v465
    %v467 = vmul.f32 %v165, %v465
    %v468 = vmul.f32 %v166, %v465
    %v469 = vmul.f32 %v167, %v465
    %v470 = vmul.f32 %v168, %v465
    %v471 = vmul.f32 %v169, %v465
    %v472 = vmul.f32 %v170, %v465
    %v473 = vmul.f32 %v171, %v465
    %v474 = vadd.f32 %v456, %v466
    %v475 = vadd.f32 %v457, %v467
    %v476 = vadd.f32 %v458, %v468
    %v477 = vadd.f32 %v459, %v469
    %v478 = vadd.f32 %v460, %v470
    %v479 = vadd.f32 %v461, %v471
    %v480 = vadd.f32 %v462, %v472
    %v481 = vadd.f32 %v463, %v473
    %s482 = sld [smem:[#allocation2 + $0x2a]]
    %v483 = vstv %s482
    %v484 = vadd.f32 %v474, %v483
    %v485 = vadd.f32 %v475, %v483
    %v486 = vadd.f32 %v476, %v483
    %v487 = vadd.f32 %v477, %v483
    %v488 = vadd.f32 %v478, %v483
    %v489 = vadd.f32 %v479, %v483
    %v490 = vadd.f32 %v480, %v483
    %v491 = vadd.f32 %v481, %v483
    %v492 = vmax.f32 %v484, 0.0
    %v493 = vmax.f32 %v485, 0.0
    %v494 = vmax.f32 %v486, 0.0
    %v495 = vmax.f32 %v487, 0.0
    %v496 = vmax.f32 %v488, 0.0
    %v497 = vmax.f32 %v489, 0.0
    %v498 = vmax.f32 %v490, 0.0
    %v499 = vmax.f32 %v491, 0.0
    %s500 = sld [smem:[#allocation2 + $0x20]]
    %v501 = vstv %s500
    %v502 = vmul.f32 %v492, %v501
    %v503 = vmul.f32 %v493, %v501
    %v504 = vmul.f32 %v494, %v501
    %v505 = vmul.f32 %v495, %v501
    %v506 = vmul.f32 %v496, %v501
    %v507 = vmul.f32 %v497, %v501
    %v508 = vmul.f32 %v498, %v501
    %v509 = vmul.f32 %v499, %v501
    %v510 = vadd.f32 %v392, %v502
    %v511 = vadd.f32 %v393, %v503
    %v512 = vadd.f32 %v394, %v504
    %v513 = vadd.f32 %v395, %v505
    %v514 = vadd.f32 %v396, %v506
    %v515 = vadd.f32 %v397, %v507
    %v516 = vadd.f32 %v398, %v508
    %v517 = vadd.f32 %v399, %v509
    %s518 = sld [smem:[#allocation2 + $0x8]]
    %v519 = vstv %s518
    %v520 = vmul.f32 %v52, %v519
    %v521 = vmul.f32 %v53, %v519
    %v522 = vmul.f32 %v54, %v519
    %v523 = vmul.f32 %v55, %v519
    %v524 = vmul.f32 %v56, %v519
    %v525 = vmul.f32 %v57, %v519
    %v526 = vmul.f32 %v58, %v519
    %v527 = vmul.f32 %v59, %v519
    %s528 = sld [smem:[#allocation2 + $0xd]]
    %v529 = vstv %s528
    %v530 = vmul.f32 %v80, %v529
    %v531 = vmul.f32 %v81, %v529
    %v532 = vmul.f32 %v82, %v529
    %v533 = vmul.f32 %v83, %v529
    %v534 = vmul.f32 %v84, %v529
    %v535 = vmul.f32 %v85, %v529
    %v536 = vmul.f32 %v86, %v529
    %v537 = vmul.f32 %v87, %v529
    %v538 = vadd.f32 %v520, %v530
    %v539 = vadd.f32 %v521, %v531
    %v540 = vadd.f32 %v522, %v532
    %v541 = vadd.f32 %v523, %v533
    %v542 = vadd.f32 %v524, %v534
    %v543 = vadd.f32 %v525, %v535
    %v544 = vadd.f32 %v526, %v536
    %v545 = vadd.f32 %v527, %v537
    %s546 = sld [smem:[#allocation2 + $0x12]]
    %v547 = vstv %s546
    %v548 = vmul.f32 %v108, %v547
    %v549 = vmul.f32 %v109, %v547
    %v550 = vmul.f32 %v110, %v547
    %v551 = vmul.f32 %v111, %v547
    %v552 = vmul.f32 %v112, %v547
    %v553 = vmul.f32 %v113, %v547
    %v554 = vmul.f32 %v114, %v547
    %v555 = vmul.f32 %v115, %v547
    %v556 = vadd.f32 %v538, %v548
    %v557 = vadd.f32 %v539, %v549
    %v558 = vadd.f32 %v540, %v550
    %v559 = vadd.f32 %v541, %v551
    %v560 = vadd.f32 %v542, %v552
    %v561 = vadd.f32 %v543, %v553
    %v562 = vadd.f32 %v544, %v554
    %v563 = vadd.f32 %v545, %v555
    %s564 = sld [smem:[#allocation2 + $0x17]]
    %v565 = vstv %s564
    %v566 = vmul.f32 %v136, %v565
    %v567 = vmul.f32 %v137, %v565
    %v568 = vmul.f32 %v138, %v565
    %v569 = vmul.f32 %v139, %v565
    %v570 = vmul.f32 %v140, %v565
    %v571 = vmul.f32 %v141, %v565
    %v572 = vmul.f32 %v142, %v565
    %v573 = vmul.f32 %v143, %v565
    %v574 = vadd.f32 %v556, %v566
    %v575 = vadd.f32 %v557, %v567
    %v576 = vadd.f32 %v558, %v568
    %v577 = vadd.f32 %v559, %v569
    %v578 = vadd.f32 %v560, %v570
    %v579 = vadd.f32 %v561, %v571
    %v580 = vadd.f32 %v562, %v572
    %v581 = vadd.f32 %v563, %v573
    %s582 = sld [smem:[#allocation2 + $0x1c]]
    %v583 = vstv %s582
    %v584 = vmul.f32 %v164, %v583
    %v585 = vmul.f32 %v165, %v583
    %v586 = vmul.f32 %v166, %v583
    %v587 = vmul.f32 %v167, %v583
    %v588 = vmul.f32 %v168, %v583
    %v589 = vmul.f32 %v169, %v583
    %v590 = vmul.f32 %v170, %v583
    %v591 = vmul.f32 %v171, %v583
    %v592 = vadd.f32 %v574, %v584
    %v593 = vadd.f32 %v575, %v585
    %v594 = vadd.f32 %v576, %v586
    %v595 = vadd.f32 %v577, %v587
    %v596 = vadd.f32 %v578, %v588
    %v597 = vadd.f32 %v579, %v589
    %v598 = vadd.f32 %v580, %v590
    %v599 = vadd.f32 %v581, %v591
    %s600 = sld [smem:[#allocation2 + $0x2b]]
    %v601 = vstv %s600
    %v602 = vadd.f32 %v592, %v601
    %v603 = vadd.f32 %v593, %v601
    %v604 = vadd.f32 %v594, %v601
    %v605 = vadd.f32 %v595, %v601
    %v606 = vadd.f32 %v596, %v601
    %v607 = vadd.f32 %v597, %v601
    %v608 = vadd.f32 %v598, %v601
    %v609 = vadd.f32 %v599, %v601
    %v610 = vmax.f32 %v602, 0.0
    %v611 = vmax.f32 %v603, 0.0
    %v612 = vmax.f32 %v604, 0.0
    %v613 = vmax.f32 %v605, 0.0
    %v614 = vmax.f32 %v606, 0.0
    %v615 = vmax.f32 %v607, 0.0
    %v616 = vmax.f32 %v608, 0.0
    %v617 = vmax.f32 %v609, 0.0
    %s618 = sld [smem:[#allocation2 + $0x21]]
    %v619 = vstv %s618
    %v620 = vmul.f32 %v610, %v619
    %v621 = vmul.f32 %v611, %v619
    %v622 = vmul.f32 %v612, %v619
    %v623 = vmul.f32 %v613, %v619
    %v624 = vmul.f32 %v614, %v619
    %v625 = vmul.f32 %v615, %v619
    %v626 = vmul.f32 %v616, %v619
    %v627 = vmul.f32 %v617, %v619
    %v628 = vadd.f32 %v510, %v620
    %v629 = vadd.f32 %v511, %v621
    %v630 = vadd.f32 %v512, %v622
    %v631 = vadd.f32 %v513, %v623
    %v632 = vadd.f32 %v514, %v624
    %v633 = vadd.f32 %v515, %v625
    %v634 = vadd.f32 %v516, %v626
    %v635 = vadd.f32 %v517, %v627
    %s636 = sld [smem:[#allocation2 + $0x9]]
    %v637 = vstv %s636
    %v638 = vmul.f32 %v52, %v637
    %v639 = vmul.f32 %v53, %v637
    %v640 = vmul.f32 %v54, %v637
    %v641 = vmul.f32 %v55, %v637
    %v642 = vmul.f32 %v56, %v637
    %v643 = vmul.f32 %v57, %v637
    %v644 = vmul.f32 %v58, %v637
    %v645 = vmul.f32 %v59, %v637
    %s646 = sld [smem:[#allocation2 + $0xe]]
    %v647 = vstv %s646
    %v648 = vmul.f32 %v80, %v647
    %v649 = vmul.f32 %v81, %v647
    %v650 = vmul.f32 %v82, %v647
    %v651 = vmul.f32 %v83, %v647
    %v652 = vmul.f32 %v84, %v647
    %v653 = vmul.f32 %v85, %v647
    %v654 = vmul.f32 %v86, %v647
    %v655 = vmul.f32 %v87, %v647
    %v656 = vadd.f32 %v638, %v648
    %v657 = vadd.f32 %v639, %v649
    %v658 = vadd.f32 %v640, %v650
    %v659 = vadd.f32 %v641, %v651
    %v660 = vadd.f32 %v642, %v652
    %v661 = vadd.f32 %v643, %v653
    %v662 = vadd.f32 %v644, %v654
    %v663 = vadd.f32 %v645, %v655
    %s664 = sld [smem:[#allocation2 + $0x13]]
    %v665 = vstv %s664
    %v666 = vmul.f32 %v108, %v665
    %v667 = vmul.f32 %v109, %v665
    %v668 = vmul.f32 %v110, %v665
    %v669 = vmul.f32 %v111, %v665
    %v670 = vmul.f32 %v112, %v665
    %v671 = vmul.f32 %v113, %v665
    %v672 = vmul.f32 %v114, %v665
    %v673 = vmul.f32 %v115, %v665
    %v674 = vadd.f32 %v656, %v666
    %v675 = vadd.f32 %v657, %v667
    %v676 = vadd.f32 %v658, %v668
    %v677 = vadd.f32 %v659, %v669
    %v678 = vadd.f32 %v660, %v670
    %v679 = vadd.f32 %v661, %v671
    %v680 = vadd.f32 %v662, %v672
    %v681 = vadd.f32 %v663, %v673
    %s682 = sld [smem:[#allocation2 + $0x18]]
    %v683 = vstv %s682
    %v684 = vmul.f32 %v136, %v683
    %v685 = vmul.f32 %v137, %v683
    %v686 = vmul.f32 %v138, %v683
    %v687 = vmul.f32 %v139, %v683
    %v688 = vmul.f32 %v140, %v683
    %v689 = vmul.f32 %v141, %v683
    %v690 = vmul.f32 %v142, %v683
    %v691 = vmul.f32 %v143, %v683
    %v692 = vadd.f32 %v674, %v684
    %v693 = vadd.f32 %v675, %v685
    %v694 = vadd.f32 %v676, %v686
    %v695 = vadd.f32 %v677, %v687
    %v696 = vadd.f32 %v678, %v688
    %v697 = vadd.f32 %v679, %v689
    %v698 = vadd.f32 %v680, %v690
    %v699 = vadd.f32 %v681, %v691
    %s700 = sld [smem:[#allocation2 + $0x1d]]
    %v701 = vstv %s700
    %v702 = vmul.f32 %v164, %v701
    %v703 = vmul.f32 %v165, %v701
    %v704 = vmul.f32 %v166, %v701
    %v705 = vmul.f32 %v167, %v701
    %v706 = vmul.f32 %v168, %v701
    %v707 = vmul.f32 %v169, %v701
    %v708 = vmul.f32 %v170, %v701
    %v709 = vmul.f32 %v171, %v701
    %v710 = vadd.f32 %v692, %v702
    %v711 = vadd.f32 %v693, %v703
    %v712 = vadd.f32 %v694, %v704
    %v713 = vadd.f32 %v695, %v705
    %v714 = vadd.f32 %v696, %v706
    %v715 = vadd.f32 %v697, %v707
    %v716 = vadd.f32 %v698, %v708
    %v717 = vadd.f32 %v699, %v709
    %s718 = sld [smem:[#allocation2 + $0x2c]]
    %v719 = vstv %s718
    %v720 = vadd.f32 %v710, %v719
    %v721 = vadd.f32 %v711, %v719
    %v722 = vadd.f32 %v712, %v719
    %v723 = vadd.f32 %v713, %v719
    %v724 = vadd.f32 %v714, %v719
    %v725 = vadd.f32 %v715, %v719
    %v726 = vadd.f32 %v716, %v719
    %v727 = vadd.f32 %v717, %v719
    %v728 = vmax.f32 %v720, 0.0
    %v729 = vmax.f32 %v721, 0.0
    %v730 = vmax.f32 %v722, 0.0
    %v731 = vmax.f32 %v723, 0.0
    %v732 = vmax.f32 %v724, 0.0
    %v733 = vmax.f32 %v725, 0.0
    %v734 = vmax.f32 %v726, 0.0
    %v735 = vmax.f32 %v727, 0.0
    %s736 = sld [smem:[#allocation2 + $0x22]]
    %v737 = vstv %s736
    %v738 = vmul.f32 %v728, %v737
    %v739 = vmul.f32 %v729, %v737
    %v740 = vmul.f32 %v730, %v737
    %v741 = vmul.f32 %v731, %v737
    %v742 = vmul.f32 %v732, %v737
    %v743 = vmul.f32 %v733, %v737
    %v744 = vmul.f32 %v734, %v737
    %v745 = vmul.f32 %v735, %v737
    %v746 = vadd.f32 %v628, %v738
    %v747 = vadd.f32 %v629, %v739
    %v748 = vadd.f32 %v630, %v740
    %v749 = vadd.f32 %v631, %v741
    %v750 = vadd.f32 %v632, %v742
    %v751 = vadd.f32 %v633, %v743
    %v752 = vadd.f32 %v634, %v744
    %v753 = vadd.f32 %v635, %v745
    %s754 = sld [smem:[#allocation2 + $0x2d]]
    %v755 = vstv %s754
    %v756 = vadd.f32 %v746, %v755
    %v757 = vadd.f32 %v747, %v755
    %v758 = vadd.f32 %v748, %v755
    %v759 = vadd.f32 %v749, %v755
    %v760 = vadd.f32 %v750, %v755
    %v761 = vadd.f32 %v751, %v755
    %v762 = vadd.f32 %v752, %v755
    %v763 = vadd.f32 %v753, %v755
    %764 = vst [vmem:[%s2] sm:$0xff] %v756
    %765 = vst [vmem:[%s2 + $0x8] sm:$0xff] %v757
    %766 = vst [vmem:[%s2 + $0x10] sm:$0xff] %v758
    %767 = vst [vmem:[%s2 + $0x18] sm:$0xff] %v759
    %768 = vst [vmem:[%s2 + $0x20] sm:$0xff] %v760
    %769 = vst [vmem:[%s2 + $0x28] sm:$0xff] %v761
    %770 = vst [vmem:[%s2 + $0x30] sm:$0xff] %v762
    %771 = vst [vmem:[%s2 + $0x38] sm:$0xff] %v763
    // Predicated region
    $region14: #{_lambda_.1} parent=1 // pred_check
      _
    $region15: #{_lambda_.1} parent=1 // pred_check_branch
      %773 = sbr.rel (0) target = $region17
    $region16: #{_lambda_.1} parent=1 // pred_region
      _
    $region17: #{_lambda_.1} parent=1 // pred_fallthru
      _
    // Predicated region
    $region18: #{_lambda_.1} parent=1 // pred_check
      _
    $region19: #{_lambda_.1} parent=1 // pred_check_branch
      %775 = sbr.rel (0) target = $region21
    $region20: #{_lambda_.1} parent=1 // pred_region
      _
    $region21: #{_lambda_.1} parent=1 // pred_fallthru
      _
    %776 = vsyncpa [#allocation3], 1

</llo_original>
